<compile_context>
chip_gen: v6e
topology: v6e:2x2x1
jax: 0.10.0
libtpu: 0.0.40
codegen_flags: <defaults>
</compile_context>

<pallas_src>
import functools
import math

import jax
import jax.numpy as jnp
from jax.experimental import pallas as pl
from jax.experimental.pallas import tpu as pltpu

NEG_SLOPE = 0.01  # F.leaky_relu default negative_slope


# ---------------------------------------------------------------------------
# Fused kernel: conv1 (in-VMEM im2col) -> conv2 -> conv3 -> Linear(C,1)
# Activations are (rows, channels): channels on the lane axis, rows on sublanes.
# ---------------------------------------------------------------------------
def _fused_disc_kernel(xb_ref, w1_ref, b1_ref, w2_ref, b2_ref,
                       w3_ref, b3_ref, wl_ref, bl_ref, o_ref,
                       *, batch, bpb, nblk1, t1, t3, k2, k3):
    # xb_ref : (batch*bpb, s1*c_in)  contiguous stride-block view of raw input
    # w1_ref : (k1*c_in, c1)   b1_ref: (1, c1)
    # w2_ref : (k2*c1, c2)     b2_ref: (1, c2)   (K-stacked conv2 taps)
    # w3_ref : (k3*c2, c3)     b3_ref: (1, c3)   (K-stacked conv3 taps)
    # wl_ref : (1, c3)         bl_ref: (1, 1)
    # o_ref  : (batch*t3, 1)

    def leaky(y):                       # one mul + one max on the VPU
        return jnp.maximum(y, NEG_SLOPE * y)

    # ---- conv1: build the im2col slab in VMEM (lane-concat of shifted stride
    # blocks; XLU/VPU work, MXU idle) then ONE K = k1*c_in contraction. ----
    rows1 = batch * bpb - nblk1 + 1     # stacked rows incl. batch-straddle junk
    xb = xb_ref[...]
    imcol = jnp.concatenate([xb[j:j + rows1, :] for j in range(nblk1)], axis=-1)
    y1 = jnp.dot(imcol, w1_ref[...],
                 preferred_element_type=jnp.float32) + b1_ref[...]
    y1 = leaky(y1)
    # dropout(p=0.0) -> no-op
    # Drop batch-straddling junk rows -> compact (batch*t1, c1).
    y1 = jnp.concatenate([y1[b * bpb:b * bpb + t1, :] for b in range(batch)],
                         axis=0)

    # ---- conv2: K-stack the k2 taps -> ONE K = k2*c1 matmul ----
    rows2 = batch * t1 - k2 + 1
    win2 = jnp.concatenate([y1[j:j + rows2, :] for j in range(k2)], axis=-1)
    y2 = jnp.dot(win2, w2_ref[...],
                 preferred_element_type=jnp.float32) + b2_ref[...]
    y2 = leaky(y2)

    # ---- conv3: K-stack the k3 taps -> ONE K = k3*c2 matmul ----
    rows3 = rows2 - k3 + 1
    win3 = jnp.concatenate([y2[j:j + rows3, :] for j in range(k3)], axis=-1)
    y3 = jnp.dot(win3, w3_ref[...],
                 preferred_element_type=jnp.float32) + b3_ref[...]
    y3 = leaky(y3)

    # ---- Linear(c3, 1): VPU multiply + lane reduction (N=1 MXU dot avoided) ----
    lin = jnp.sum(y3 * wl_ref[...], axis=-1, keepdims=True) + bl_ref[...]  # (rows3,1)

    # Keep only the t3 valid rows per batch (rest straddle batch boundaries).
    out = jnp.concatenate([lin[b * t1:b * t1 + t3, :] for b in range(batch)],
                          axis=0)
    o_ref[...] = out.astype(o_ref.dtype)


def discriminator_cnn_forward(x, convs, conv_stride, lin_w, lin_b):
    """x: (batch, max_src_len, in_size) -> (batch, curr_len)."""
    (w1, b1), (w2, b2), (w3, b3) = convs
    s1, s2, s3 = conv_stride
    assert s2 == 1 and s3 == 1, "fused kernel assumes stride 1 for conv2/conv3"

    bsz, t_in, c_in = x.shape
    k1, _, c1 = w1.shape
    k2, _, c2 = w2.shape
    k3, _, c3 = w3.shape
    assert k1 % s1 == 0 and t_in % s1 == 0, "stride-block conv1 needs s1|k1, s1|T"
    t1 = (t_in - k1) // s1 + 1
    t2 = t1 - k2 + 1
    t3 = t2 - k3 + 1

    # Free, contiguous reshapes only (no im2col gather, no extra HBM round trip).
    bpb = t_in // s1                    # stride blocks per batch element
    nblk1 = k1 // s1                    # stride blocks per conv1 window
    xb = x.reshape(bsz * bpb, s1 * c_in)
    w1s = w1.reshape(k1 * c_in, c1)
    w2s = w2.reshape(k2 * c1, c2)       # K-stacked conv2 weight
    w3s = w3.reshape(k3 * c2, c3)       # K-stacked conv3 weight
    wl_row = lin_w.reshape(1, c3)

    kernel = functools.partial(_fused_disc_kernel, batch=bsz, bpb=bpb,
                               nblk1=nblk1, t1=t1, t3=t3, k2=k2, k3=k3)

    rows1 = bsz * bpb - nblk1 + 1
    rows2 = bsz * t1 - k2 + 1
    rows3 = rows2 - k3 + 1
    flops = 2 * (rows1 * k1 * c_in * c1 + rows2 * k2 * c1 * c2
                 + rows3 * k3 * c2 * c3 + rows3 * c3)
    bytes_accessed = 4 * (xb.size + w1s.size + b1.size + w2s.size + b2.size
                          + w3s.size + b3.size + wl_row.size + lin_b.size
                          + bsz * t3)

    out = pl.pallas_call(
        kernel,
        out_shape=jax.ShapeDtypeStruct((bsz * t3, 1), x.dtype),
        grid_spec=pltpu.PrefetchScalarGridSpec(
            num_scalar_prefetch=0,
            grid=(1,),  # whole (tiny) workload in one step on ONE TensorCore
            in_specs=[
                pl.BlockSpec((bsz * bpb, s1 * c_in), lambda i: (0, 0)),
                pl.BlockSpec((k1 * c_in, c1), lambda i: (0, 0)),
                pl.BlockSpec((1, c1), lambda i: (0, 0)),
                pl.BlockSpec((k2 * c1, c2), lambda i: (0, 0)),
                pl.BlockSpec((1, c2), lambda i: (0, 0)),
                pl.BlockSpec((k3 * c2, c3), lambda i: (0, 0)),
                pl.BlockSpec((1, c3), lambda i: (0, 0)),
                pl.BlockSpec((1, c3), lambda i: (0, 0)),
                pl.BlockSpec((1, 1), lambda i: (0, 0)),
            ],
            out_specs=pl.BlockSpec((bsz * t3, 1), lambda i: (0, 0)),
        ),
        compiler_params=pltpu.CompilerParams(
            dimension_semantics=("arbitrary",)),
        cost_estimate=pl.CostEstimate(flops=flops, transcendentals=0,
                                      bytes_accessed=bytes_accessed),
    )(xb, w1s, b1, w2s, b2, w3s, b3, wl_row, lin_b)

    return out.reshape(bsz, t3)  # == res.view(batch, curr_len)


# ---------------------------------------------------------------------------
# Parameter init (deterministic, PyTorch-default-like uniform bounds)
# ---------------------------------------------------------------------------
def init_params(key, in_size, conv_ch, conv_ksize):
    keys = jax.random.split(key, 2 * len(conv_ch) + 2)
    convs = []
    prev = in_size
    for i, (c, k) in enumerate(zip(conv_ch, conv_ksize)):
        bound = 1.0 / math.sqrt(prev * k)
        w = jax.random.uniform(keys[2 * i], (k, prev, c), jnp.float32, -bound, bound)
        b = jax.random.uniform(keys[2 * i + 1], (1, c), jnp.float32, -bound, bound)
        convs.append((w, b))
        prev = c
    bound = 1.0 / math.sqrt(prev)
    lin_w = jax.random.uniform(keys[-2], (prev, 1), jnp.float32, -bound, bound)
    lin_b = jax.random.uniform(keys[-1], (1, 1), jnp.float32, -bound, bound)
    return convs, lin_w, lin_b


# ---------------------------------------------------------------------------
if __name__ == "__main__":
    # Module defaults: conv_ch=[64,128,128], conv_ksize=[40,5,3], conv_stride=[2,1,1]
    B, T, IN_SIZE = 2, 64, 8
    conv_ch = [64, 128, 128]
    conv_ksize = [40, 5, 3]
    conv_stride = [2, 1, 1]

    key = jax.random.PRNGKey(0)
    k_x, k_p = jax.random.split(key)
    x = jax.random.normal(k_x, (B, T, IN_SIZE), jnp.float32)
    convs, lin_w, lin_b = init_params(k_p, IN_SIZE, conv_ch, conv_ksize)

    # jit so the (free) wrapper reshapes fuse into one executable with the kernel.
    fwd = jax.jit(lambda x, convs, lin_w, lin_b:
                  discriminator_cnn_forward(x, convs, conv_stride, lin_w, lin_b))
    out = jax.block_until_ready(fwd(x, convs, lin_w, lin_b))

    # Plain-JAX reference for verification (glue, not part of the kernel).
    ref = x
    for (w, b), s in zip(convs, conv_stride):
        ref = jax.lax.conv_general_dilated(
            ref, w, (s,), "VALID",
            dimension_numbers=("NWC", "WIO", "NWC"),
            precision=jax.lax.Precision.HIGHEST)
        ref = ref + b.reshape(1, 1, -1)
        ref = jnp.where(ref >= 0, ref, NEG_SLOPE * ref)
    ref = jnp.einsum("btc,co->bto", ref, lin_w,
                     precision=jax.lax.Precision.HIGHEST)[..., 0] + lin_b[0, 0]

    # T goes 64 -> 13 -> 9 -> 7
    assert out.shape == (B, 7), out.shape
    # Tolerance allows for matmul-precision differences between the kernel's
    # f32-accumulated MXU dots and the HIGHEST-precision XLA reference.
    max_err = float(jnp.max(jnp.abs(out - ref)))
    assert jnp.allclose(out, ref, atol=5e-3, rtol=5e-3), max_err
    print("KERNEL_OK")
</pallas_src>

<mosaic_0001>
module attributes {stable_mosaic.version = 11 : i64} {
  func.func @_fused_disc_kernel(%arg0: i32, %arg1: memref<64x16xf32, #tpu.memory_space<vmem>>, %arg2: memref<320x64xf32, #tpu.memory_space<vmem>>, %arg3: memref<1x64xf32, #tpu.memory_space<vmem>>, %arg4: memref<320x128xf32, #tpu.memory_space<vmem>>, %arg5: memref<1x128xf32, #tpu.memory_space<vmem>>, %arg6: memref<384x128xf32, #tpu.memory_space<vmem>>, %arg7: memref<1x128xf32, #tpu.memory_space<vmem>>, %arg8: memref<1x128xf32, #tpu.memory_space<vmem>>, %arg9: memref<1x1xf32, #tpu.memory_space<vmem>>, %arg10: memref<14x1xf32, #tpu.memory_space<vmem>>) attributes {dimension_semantics = [#tpu.dimension_semantics<arbitrary>], iteration_bounds = array<i64: 1>, scalar_prefetch = 0 : i64, scratch_operands = 0 : i64, tpu.core_type = #tpu.core_type<tc>, window_params = [{pipeline_mode = #tpu.pipeline_mode<synchronous>, transform_indices = @transform_0, window_bounds = array<i64: 64, 16>}, {pipeline_mode = #tpu.pipeline_mode<synchronous>, transform_indices = @transform_1, window_bounds = array<i64: 320, 64>}, {pipeline_mode = #tpu.pipeline_mode<synchronous>, transform_indices = @transform_2, window_bounds = array<i64: 1, 64>}, {pipeline_mode = #tpu.pipeline_mode<synchronous>, transform_indices = @transform_3, window_bounds = array<i64: 320, 128>}, {pipeline_mode = #tpu.pipeline_mode<synchronous>, transform_indices = @transform_4, window_bounds = array<i64: 1, 128>}, {pipeline_mode = #tpu.pipeline_mode<synchronous>, transform_indices = @transform_5, window_bounds = array<i64: 384, 128>}, {pipeline_mode = #tpu.pipeline_mode<synchronous>, transform_indices = @transform_6, window_bounds = array<i64: 1, 128>}, {pipeline_mode = #tpu.pipeline_mode<synchronous>, transform_indices = @transform_7, window_bounds = array<i64: 1, 128>}, {pipeline_mode = #tpu.pipeline_mode<synchronous>, transform_indices = @transform_8, window_bounds = array<i64: 1, 1>}, {pipeline_mode = #tpu.pipeline_mode<synchronous>, transform_indices = @transform_9, window_bounds = array<i64: 14, 1>}]} {
    %c0 = arith.constant 0 : index
    %c0_0 = arith.constant 0 : index
    %0 = vector.load %arg1[%c0, %c0_0] : memref<64x16xf32, #tpu.memory_space<vmem>>, vector<64x16xf32>
    %1 = vector.extract_strided_slice %0 {offsets = [0, 0], sizes = [45, 16], strides = [1, 1]} : vector<64x16xf32> to vector<45x16xf32>
    %2 = vector.extract_strided_slice %0 {offsets = [1, 0], sizes = [45, 16], strides = [1, 1]} : vector<64x16xf32> to vector<45x16xf32>
    %3 = vector.extract_strided_slice %0 {offsets = [2, 0], sizes = [45, 16], strides = [1, 1]} : vector<64x16xf32> to vector<45x16xf32>
    %4 = vector.extract_strided_slice %0 {offsets = [3, 0], sizes = [45, 16], strides = [1, 1]} : vector<64x16xf32> to vector<45x16xf32>
    %5 = vector.extract_strided_slice %0 {offsets = [4, 0], sizes = [45, 16], strides = [1, 1]} : vector<64x16xf32> to vector<45x16xf32>
    %6 = vector.extract_strided_slice %0 {offsets = [5, 0], sizes = [45, 16], strides = [1, 1]} : vector<64x16xf32> to vector<45x16xf32>
    %7 = vector.extract_strided_slice %0 {offsets = [6, 0], sizes = [45, 16], strides = [1, 1]} : vector<64x16xf32> to vector<45x16xf32>
    %8 = vector.extract_strided_slice %0 {offsets = [7, 0], sizes = [45, 16], strides = [1, 1]} : vector<64x16xf32> to vector<45x16xf32>
    %9 = vector.extract_strided_slice %0 {offsets = [8, 0], sizes = [45, 16], strides = [1, 1]} : vector<64x16xf32> to vector<45x16xf32>
    %10 = vector.extract_strided_slice %0 {offsets = [9, 0], sizes = [45, 16], strides = [1, 1]} : vector<64x16xf32> to vector<45x16xf32>
    %11 = vector.extract_strided_slice %0 {offsets = [10, 0], sizes = [45, 16], strides = [1, 1]} : vector<64x16xf32> to vector<45x16xf32>
    %12 = vector.extract_strided_slice %0 {offsets = [11, 0], sizes = [45, 16], strides = [1, 1]} : vector<64x16xf32> to vector<45x16xf32>
    %13 = vector.extract_strided_slice %0 {offsets = [12, 0], sizes = [45, 16], strides = [1, 1]} : vector<64x16xf32> to vector<45x16xf32>
    %14 = vector.extract_strided_slice %0 {offsets = [13, 0], sizes = [45, 16], strides = [1, 1]} : vector<64x16xf32> to vector<45x16xf32>
    %15 = vector.extract_strided_slice %0 {offsets = [14, 0], sizes = [45, 16], strides = [1, 1]} : vector<64x16xf32> to vector<45x16xf32>
    %16 = vector.extract_strided_slice %0 {offsets = [15, 0], sizes = [45, 16], strides = [1, 1]} : vector<64x16xf32> to vector<45x16xf32>
    %17 = vector.extract_strided_slice %0 {offsets = [16, 0], sizes = [45, 16], strides = [1, 1]} : vector<64x16xf32> to vector<45x16xf32>
    %18 = vector.extract_strided_slice %0 {offsets = [17, 0], sizes = [45, 16], strides = [1, 1]} : vector<64x16xf32> to vector<45x16xf32>
    %19 = vector.extract_strided_slice %0 {offsets = [18, 0], sizes = [45, 16], strides = [1, 1]} : vector<64x16xf32> to vector<45x16xf32>
    %20 = vector.extract_strided_slice %0 {offsets = [19, 0], sizes = [45, 16], strides = [1, 1]} : vector<64x16xf32> to vector<45x16xf32>
    %21 = tpu.concatenate %1, %2, %3, %4, %5, %6, %7, %8, %9, %10, %11, %12, %13, %14, %15, %16 in 1 : vector<45x16xf32>, vector<45x16xf32>, vector<45x16xf32>, vector<45x16xf32>, vector<45x16xf32>, vector<45x16xf32>, vector<45x16xf32>, vector<45x16xf32>, vector<45x16xf32>, vector<45x16xf32>, vector<45x16xf32>, vector<45x16xf32>, vector<45x16xf32>, vector<45x16xf32>, vector<45x16xf32>, vector<45x16xf32> -> vector<45x256xf32>
    %22 = tpu.concatenate %17, %18, %19, %20 in 1 : vector<45x16xf32>, vector<45x16xf32>, vector<45x16xf32>, vector<45x16xf32> -> vector<45x64xf32>
    %23 = tpu.concatenate %21, %22 in 1 : vector<45x256xf32>, vector<45x64xf32> -> vector<45x320xf32>
    %c0_1 = arith.constant 0 : index
    %c0_2 = arith.constant 0 : index
    %24 = vector.load %arg2[%c0_1, %c0_2] : memref<320x64xf32, #tpu.memory_space<vmem>>, vector<320x64xf32>
    %cst = arith.constant dense<0.000000e+00> : vector<45x64xf32>
    %25 = tpu.matmul %23, %24, %cst {dimension_numbers = #tpu.dot_dimension_numbers<[1], [0], [0], [1], [0, 0, 1, 1], [], []>} : vector<45x320xf32>, vector<320x64xf32>, vector<45x64xf32> -> vector<45x64xf32>
    %c0_3 = arith.constant 0 : index
    %c0_4 = arith.constant 0 : index
    %26 = vector.load %arg3[%c0_3, %c0_4] : memref<1x64xf32, #tpu.memory_space<vmem>>, vector<1x64xf32>
    %27 = vector.broadcast %26 : vector<1x64xf32> to vector<45x64xf32>
    %28 = arith.addf %25, %27 : vector<45x64xf32>
    %cst_5 = arith.constant 0.00999999977 : f32
    %29 = vector.broadcast %cst_5 : f32 to vector<45x64xf32>
    %30 = arith.mulf %29, %28 : vector<45x64xf32>
    %31 = arith.maximumf %28, %30 : vector<45x64xf32>
    %32 = vector.extract_strided_slice %31 {offsets = [0, 0], sizes = [13, 64], strides = [1, 1]} : vector<45x64xf32> to vector<13x64xf32>
    %33 = vector.extract_strided_slice %31 {offsets = [32, 0], sizes = [13, 64], strides = [1, 1]} : vector<45x64xf32> to vector<13x64xf32>
    %34 = tpu.concatenate %32, %33 in 0 : vector<13x64xf32>, vector<13x64xf32> -> vector<26x64xf32>
    %35 = vector.extract_strided_slice %34 {offsets = [0, 0], sizes = [22, 64], strides = [1, 1]} : vector<26x64xf32> to vector<22x64xf32>
    %36 = vector.extract_strided_slice %34 {offsets = [1, 0], sizes = [22, 64], strides = [1, 1]} : vector<26x64xf32> to vector<22x64xf32>
    %37 = vector.extract_strided_slice %34 {offsets = [2, 0], sizes = [22, 64], strides = [1, 1]} : vector<26x64xf32> to vector<22x64xf32>
    %38 = vector.extract_strided_slice %34 {offsets = [3, 0], sizes = [22, 64], strides = [1, 1]} : vector<26x64xf32> to vector<22x64xf32>
    %39 = vector.extract_strided_slice %34 {offsets = [4, 0], sizes = [22, 64], strides = [1, 1]} : vector<26x64xf32> to vector<22x64xf32>
    %40 = tpu.concatenate %35, %36, %37, %38, %39 in 1 : vector<22x64xf32>, vector<22x64xf32>, vector<22x64xf32>, vector<22x64xf32>, vector<22x64xf32> -> vector<22x320xf32>
    %c0_6 = arith.constant 0 : index
    %c0_7 = arith.constant 0 : index
    %41 = vector.load %arg4[%c0_6, %c0_7] : memref<320x128xf32, #tpu.memory_space<vmem>>, vector<320x128xf32>
    %cst_8 = arith.constant dense<0.000000e+00> : vector<22x128xf32>
    %42 = tpu.matmul %40, %41, %cst_8 {dimension_numbers = #tpu.dot_dimension_numbers<[1], [0], [0], [1], [0, 0, 1, 1], [], []>} : vector<22x320xf32>, vector<320x128xf32>, vector<22x128xf32> -> vector<22x128xf32>
    %c0_9 = arith.constant 0 : index
    %c0_10 = arith.constant 0 : index
    %43 = vector.load %arg5[%c0_9, %c0_10] : memref<1x128xf32, #tpu.memory_space<vmem>>, vector<1x128xf32>
    %44 = vector.broadcast %43 : vector<1x128xf32> to vector<22x128xf32>
    %45 = arith.addf %42, %44 : vector<22x128xf32>
    %cst_11 = arith.constant 0.00999999977 : f32
    %46 = vector.broadcast %cst_11 : f32 to vector<22x128xf32>
    %47 = arith.mulf %46, %45 : vector<22x128xf32>
    %48 = arith.maximumf %45, %47 : vector<22x128xf32>
    %49 = vector.extract_strided_slice %48 {offsets = [0, 0], sizes = [20, 128], strides = [1, 1]} : vector<22x128xf32> to vector<20x128xf32>
    %50 = vector.extract_strided_slice %48 {offsets = [1, 0], sizes = [20, 128], strides = [1, 1]} : vector<22x128xf32> to vector<20x128xf32>
    %51 = vector.extract_strided_slice %48 {offsets = [2, 0], sizes = [20, 128], strides = [1, 1]} : vector<22x128xf32> to vector<20x128xf32>
    %52 = tpu.concatenate %49, %50, %51 in 1 : vector<20x128xf32>, vector<20x128xf32>, vector<20x128xf32> -> vector<20x384xf32>
    %c0_12 = arith.constant 0 : index
    %c0_13 = arith.constant 0 : index
    %53 = vector.load %arg6[%c0_12, %c0_13] : memref<384x128xf32, #tpu.memory_space<vmem>>, vector<384x128xf32>
    %cst_14 = arith.constant dense<0.000000e+00> : vector<20x128xf32>
    %54 = tpu.matmul %52, %53, %cst_14 {dimension_numbers = #tpu.dot_dimension_numbers<[1], [0], [0], [1], [0, 0, 1, 1], [], []>} : vector<20x384xf32>, vector<384x128xf32>, vector<20x128xf32> -> vector<20x128xf32>
    %c0_15 = arith.constant 0 : index
    %c0_16 = arith.constant 0 : index
    %55 = vector.load %arg7[%c0_15, %c0_16] : memref<1x128xf32, #tpu.memory_space<vmem>>, vector<1x128xf32>
    %56 = vector.broadcast %55 : vector<1x128xf32> to vector<20x128xf32>
    %57 = arith.addf %54, %56 : vector<20x128xf32>
    %cst_17 = arith.constant 0.00999999977 : f32
    %58 = vector.broadcast %cst_17 : f32 to vector<20x128xf32>
    %59 = arith.mulf %58, %57 : vector<20x128xf32>
    %60 = arith.maximumf %57, %59 : vector<20x128xf32>
    %c0_18 = arith.constant 0 : index
    %c0_19 = arith.constant 0 : index
    %61 = vector.load %arg8[%c0_18, %c0_19] : memref<1x128xf32, #tpu.memory_space<vmem>>, vector<1x128xf32>
    %62 = vector.broadcast %61 : vector<1x128xf32> to vector<20x128xf32>
    %63 = arith.mulf %60, %62 : vector<20x128xf32>
    %cst_20 = arith.constant dense<0.000000e+00> : vector<20xf32>
    %64 = vector.multi_reduction <add>, %63, %cst_20 [1] : vector<20x128xf32> to vector<20xf32>
    %65 = vector.shape_cast %64 : vector<20xf32> to vector<20x1xf32>
    %c0_21 = arith.constant 0 : index
    %c0_22 = arith.constant 0 : index
    %66 = vector.load %arg9[%c0_21, %c0_22] : memref<1x1xf32, #tpu.memory_space<vmem>>, vector<1x1xf32>
    %67 = vector.broadcast %66 : vector<1x1xf32> to vector<20x1xf32>
    %68 = arith.addf %65, %67 : vector<20x1xf32>
    %69 = vector.extract_strided_slice %68 {offsets = [0, 0], sizes = [7, 1], strides = [1, 1]} : vector<20x1xf32> to vector<7x1xf32>
    %70 = vector.extract_strided_slice %68 {offsets = [13, 0], sizes = [7, 1], strides = [1, 1]} : vector<20x1xf32> to vector<7x1xf32>
    %71 = tpu.concatenate %69, %70 in 0 : vector<7x1xf32>, vector<7x1xf32> -> vector<14x1xf32>
    %c0_23 = arith.constant 0 : index
    %c0_24 = arith.constant 0 : index
    %72 = vector.load %arg10[%c0_23, %c0_24] : memref<14x1xf32, #tpu.memory_space<vmem>>, vector<14x1xf32>
    tpu.vector_store %arg10[%c0_23, %c0_24], %71 {strides = array<i32>} : memref<14x1xf32, #tpu.memory_space<vmem>>, vector<14x1xf32>,
    return
  }
  func.func @transform_0(%arg0: i32) -> (i32, i32) {
    %c0_i32 = arith.constant 0 : i32
    %c0_i32_0 = arith.constant 0 : i32
    %c0_i32_1 = arith.constant 0 : i32
    return %c0_i32, %c0_i32_0 : i32, i32
  }
  func.func @transform_1(%arg0: i32) -> (i32, i32) {
    %c0_i32 = arith.constant 0 : i32
    %c0_i32_0 = arith.constant 0 : i32
    %c0_i32_1 = arith.constant 0 : i32
    return %c0_i32, %c0_i32_0 : i32, i32
  }
  func.func @transform_2(%arg0: i32) -> (i32, i32) {
    %c0_i32 = arith.constant 0 : i32
    %c0_i32_0 = arith.constant 0 : i32
    %c0_i32_1 = arith.constant 0 : i32
    return %c0_i32, %c0_i32_0 : i32, i32
  }
  func.func @transform_3(%arg0: i32) -> (i32, i32) {
    %c0_i32 = arith.constant 0 : i32
    %c0_i32_0 = arith.constant 0 : i32
    %c0_i32_1 = arith.constant 0 : i32
    return %c0_i32, %c0_i32_0 : i32, i32
  }
  func.func @transform_4(%arg0: i32) -> (i32, i32) {
    %c0_i32 = arith.constant 0 : i32
    %c0_i32_0 = arith.constant 0 : i32
    %c0_i32_1 = arith.constant 0 : i32
    return %c0_i32, %c0_i32_0 : i32, i32
  }
  func.func @transform_5(%arg0: i32) -> (i32, i32) {
    %c0_i32 = arith.constant 0 : i32
    %c0_i32_0 = arith.constant 0 : i32
    %c0_i32_1 = arith.constant 0 : i32
    return %c0_i32, %c0_i32_0 : i32, i32
  }
  func.func @transform_6(%arg0: i32) -> (i32, i32) {
    %c0_i32 = arith.constant 0 : i32
    %c0_i32_0 = arith.constant 0 : i32
    %c0_i32_1 = arith.constant 0 : i32
    return %c0_i32, %c0_i32_0 : i32, i32
  }
  func.func @transform_7(%arg0: i32) -> (i32, i32) {
    %c0_i32 = arith.constant 0 : i32
    %c0_i32_0 = arith.constant 0 : i32
    %c0_i32_1 = arith.constant 0 : i32
    return %c0_i32, %c0_i32_0 : i32, i32
  }
  func.func @transform_8(%arg0: i32) -> (i32, i32) {
    %c0_i32 = arith.constant 0 : i32
    %c0_i32_0 = arith.constant 0 : i32
    %c0_i32_1 = arith.constant 0 : i32
    return %c0_i32, %c0_i32_0 : i32, i32
  }
  func.func @transform_9(%arg0: i32) -> (i32, i32) {
    %c0_i32 = arith.constant 0 : i32
    %c0_i32_0 = arith.constant 0 : i32
    %c0_i32_1 = arith.constant 0 : i32
    return %c0_i32, %c0_i32_0 : i32, i32
  }
}

</mosaic_0001>

<llo_original>
// kernel: _lambda_.1
$region0: #{_lambda_.1}
  #allocation0 [shape = 'u32[]', space=smem, size = 0x4, offset = 0x4, fixed_abs, tag = 'smem constant byte address 0x4 - core index']
  #allocation1 [shape = 'u32[144,128]{1,0:T(1,128)}', space=vmem, size = 0x12000, scoped, tag = 'internal scratch']
  #allocation2 [shape = 'f32[1,1]{1,0:T(1,128)S(1)}', space=vmem, size = 0x200, scoped, tag = 'scoped memory for _lambda_.1']
  %s0 = inlined_call_operand.vmem [shape: f32[64,16], index: 0, kind: input, shape index: {}]
  %s1 = inlined_call_operand.vmem [shape: f32[320,64], index: 1, kind: input, shape index: {}]
  %s2 = inlined_call_operand.vmem [shape: f32[1,64], index: 2, kind: input, shape index: {}]
  %s3 = inlined_call_operand.hbm [shape: f32[320,128], index: 3, kind: input, shape index: {}]
  %s4 = inlined_call_operand.vmem [shape: f32[1,128], index: 4, kind: input, shape index: {}]
  %s5 = inlined_call_operand.hbm [shape: f32[384,128], index: 5, kind: input, shape index: {}]
  %s6 = inlined_call_operand.vmem [shape: f32[1,128], index: 6, kind: input, shape index: {}]
  %s7 = inlined_call_operand.vmem [shape: f32[1,128], index: 7, kind: input, shape index: {}]
  %s8 = inlined_call_operand.<no memory space> [shape: f32[1,1], index: 8, kind: input, shape index: {}]
  %s9 = inlined_call_operand.vmem [shape: f32[14,1], index: 9, kind: output, shape index: {}]
  %s10 = sld [smem:[#allocation0]]
  $region54: #{_lambda_.1} parent=0
    _
  %s12 = ssub.s32 1, %s10
  %s13 = scalar_select 0, %s12, %s10
  %v14 = vstv %s8
  %15 = vst [vmem:[#allocation2] sm:$0x1] %v14
  $region1: #{_lambda_.1} parent=0
    #allocation3 [shape = 'u8[163840]{0}', space=vmem, size = 0x28000, scoped, tag = 'input window, operand 3, single buffered']
    #allocation4 [shape = 's32[1]{0}', space=sflag, size = 0x4, scoped, tag = 'scoped memory for _lambda_.1']
    #allocation5 [shape = 'u8[196608]{0}', space=vmem, size = 0x30000, scoped, tag = 'input window, operand 5, single buffered']
    #allocation6 [shape = 's32[1]{0}', space=sflag, size = 0x4, scoped, tag = 'scoped memory for _lambda_.1']
    %16 = vsyncpa [#allocation4], 0
    %17 = vsyncpa [#allocation6], 0
    // Predicated region
    $region2: #{_lambda_.1} parent=1 // pred_check
      _
    $region3: #{_lambda_.1} parent=1 // pred_check_branch
      %19 = sbr.rel (0) target = $region5
    $region4: #{_lambda_.1} parent=1 // pred_region
      _
    $region5: #{_lambda_.1} parent=1 // pred_fallthru
      _
    // Predicated region
    $region6: #{_lambda_.1} parent=1 // pred_check
      _
    $region7: #{_lambda_.1} parent=1 // pred_check_branch
      %21 = sbr.rel (0) target = $region9
    $region8: #{_lambda_.1} parent=1 // pred_region
      _
    $region9: #{_lambda_.1} parent=1 // pred_fallthru
      _
    // Predicated region
    $region10: #{_lambda_.1} parent=1 // pred_check
      _
    $region11: #{_lambda_.1} parent=1 // pred_check_branch
      %23 = sbr.rel (0) target = $region13
    $region12: #{_lambda_.1} parent=1 // pred_region
      _
    $region13: #{_lambda_.1} parent=1 // pred_fallthru
      _
    // Predicated region
    $region14: #{_lambda_.1} parent=1 // pred_check
      _
    $region15: #{_lambda_.1} parent=1 // pred_check_branch
      %25 = sbr.rel (0) target = $region17
    $region16: #{_lambda_.1} parent=1 // pred_region
      %s27 = ssub.s32 5120, 5120
      %28 = vsyncadd [#allocation4], %s27
      %s29 = sshll.u32 [#allocation3], 4
      %s30 = int_to_ptr.vmem [resolvable:$true] %s29
      %35 = dma.hbm_to_vmem [thread:$0]  %s3, 5120, %s30, [#allocation4], 128, 128, 8
    $region17: #{_lambda_.1} parent=1 // pred_fallthru
      _
    // Predicated region
    $region18: #{_lambda_.1} parent=1 // pred_check
      _
    $region19: #{_lambda_.1} parent=1 // pred_check_branch
      %37 = sbr.rel (0) target = $region21
    $region20: #{_lambda_.1} parent=1 // pred_region
      _
    $region21: #{_lambda_.1} parent=1 // pred_fallthru
      _
    // Predicated region
    $region22: #{_lambda_.1} parent=1 // pred_check
      _
    $region23: #{_lambda_.1} parent=1 // pred_check_branch
      %39 = sbr.rel (0) target = $region25
    $region24: #{_lambda_.1} parent=1 // pred_region
      %s41 = ssub.s32 6144, 6144
      %42 = vsyncadd [#allocation6], %s41
      %s43 = sshll.u32 [#allocation5], 4
      %s44 = int_to_ptr.vmem [resolvable:$true] %s43
      %49 = dma.hbm_to_vmem [thread:$0]  %s5, 6144, %s44, [#allocation6], 128, 128, 8
    $region25: #{_lambda_.1} parent=1 // pred_fallthru
      _
    // Predicated region
    $region26: #{_lambda_.1} parent=1 // pred_check
      _
    $region27: #{_lambda_.1} parent=1 // pred_check_branch
      %51 = sbr.rel (0) target = $region29
    $region28: #{_lambda_.1} parent=1 // pred_region
      _
    $region29: #{_lambda_.1} parent=1 // pred_fallthru
      _
    // Predicated region
    $region30: #{_lambda_.1} parent=1 // pred_check
      _
    $region31: #{_lambda_.1} parent=1 // pred_check_branch
      %53 = sbr.rel (0) target = $region33
    $region32: #{_lambda_.1} parent=1 // pred_region
      _
    $region33: #{_lambda_.1} parent=1 // pred_fallthru
      _
    // Predicated region
    $region34: #{_lambda_.1} parent=1 // pred_check
      _
    $region35: #{_lambda_.1} parent=1 // pred_check_branch
      %55 = sbr.rel (0) target = $region37
    $region36: #{_lambda_.1} parent=1 // pred_region
      _
    $region37: #{_lambda_.1} parent=1 // pred_fallthru
      _
    // Predicated region
    $region38: #{_lambda_.1} parent=1 // pred_check
      _
    $region39: #{_lambda_.1} parent=1 // pred_check_branch
      %57 = sbr.rel (0) target = $region41
    $region40: #{_lambda_.1} parent=1 // pred_region
      %58 = dma.done [#allocation4], 5120
    $region41: #{_lambda_.1} parent=1 // pred_fallthru
      _
    // Predicated region
    $region42: #{_lambda_.1} parent=1 // pred_check
      _
    $region43: #{_lambda_.1} parent=1 // pred_check_branch
      %60 = sbr.rel (0) target = $region45
    $region44: #{_lambda_.1} parent=1 // pred_region
      %61 = dma.done [#allocation6], 6144
    $region45: #{_lambda_.1} parent=1 // pred_fallthru
      _
    %v62 = vld [vmem:[%s0] sm:$0xff]
    %v63 = vld [vmem:[%s0 + $0x8] sm:$0xff]
    %v64 = vld [vmem:[%s0 + $0x10] sm:$0xff]
    %v65 = vld [vmem:[%s0 + $0x18] sm:$0xff]
    %v66 = vld [vmem:[%s0 + $0x20] sm:$0xff]
    %v67 = vld [vmem:[%s0 + $0x28] sm:$0xff]
    %v68 = vld [vmem:[%s0 + $0x30] sm:$0xff]
    %v69 = vld [vmem:[%s0 + $0x38] sm:$0xff]
    %vm76 = vcmask 1046528
    %v77 = vrot.slane %v62, 1
    %v78 = vrot.slane %v63, 1
    %v79 = vsel %vm76, %v77, %v78
    %v80 = vrot.slane %v64, 1
    %v81 = vsel %vm76, %v78, %v80
    %v82 = vrot.slane %v65, 1
    %v83 = vsel %vm76, %v80, %v82
    %v84 = vrot.slane %v66, 1
    %v85 = vsel %vm76, %v82, %v84
    %v86 = vrot.slane %v67, 1
    %v87 = vsel %vm76, %v84, %v86
    %88 = vrot.lane.b32.xlu0 %v79, 16
    %v89 = vpop.permute.xlu0 %88
    %90 = vrot.lane.b32.xlu0 %v81, 16
    %v91 = vpop.permute.xlu0 %90
    %92 = vrot.lane.b32.xlu0 %v83, 16
    %v93 = vpop.permute.xlu0 %92
    %94 = vrot.lane.b32.xlu0 %v85, 16
    %v95 = vpop.permute.xlu0 %94
    %96 = vrot.lane.b32.xlu0 %v87, 16
    %v97 = vpop.permute.xlu0 %96
    %98 = vrot.lane.b32.xlu0 %v86, 16
    %v99 = vpop.permute.xlu0 %98
    %vm106 = vcmask 1045504
    %v107 = vrot.slane %v62, 2
    %v108 = vrot.slane %v63, 2
    %v109 = vsel %vm106, %v107, %v108
    %v110 = vrot.slane %v64, 2
    %v111 = vsel %vm106, %v108, %v110
    %v112 = vrot.slane %v65, 2
    %v113 = vsel %vm106, %v110, %v112
    %v114 = vrot.slane %v66, 2
    %v115 = vsel %vm106, %v112, %v114
    %v116 = vrot.slane %v67, 2
    %v117 = vsel %vm106, %v114, %v116
    %118 = vrot.lane.b32.xlu0 %v109, 32
    %v119 = vpop.permute.xlu0 %118
    %120 = vrot.lane.b32.xlu0 %v111, 32
    %v121 = vpop.permute.xlu0 %120
    %122 = vrot.lane.b32.xlu0 %v113, 32
    %v123 = vpop.permute.xlu0 %122
    %124 = vrot.lane.b32.xlu0 %v115, 32
    %v125 = vpop.permute.xlu0 %124
    %126 = vrot.lane.b32.xlu0 %v117, 32
    %v127 = vpop.permute.xlu0 %126
    %128 = vrot.lane.b32.xlu0 %v116, 32
    %v129 = vpop.permute.xlu0 %128
    %vm136 = vcmask 1044480
    %v137 = vrot.slane %v62, 3
    %v138 = vrot.slane %v63, 3
    %v139 = vsel %vm136, %v137, %v138
    %v140 = vrot.slane %v64, 3
    %v141 = vsel %vm136, %v138, %v140
    %v142 = vrot.slane %v65, 3
    %v143 = vsel %vm136, %v140, %v142
    %v144 = vrot.slane %v66, 3
    %v145 = vsel %vm136, %v142, %v144
    %v146 = vrot.slane %v67, 3
    %v147 = vsel %vm136, %v144, %v146
    %148 = vrot.lane.b32.xlu0 %v139, 48
    %v149 = vpop.permute.xlu0 %148
    %150 = vrot.lane.b32.xlu0 %v141, 48
    %v151 = vpop.permute.xlu0 %150
    %152 = vrot.lane.b32.xlu0 %v143, 48
    %v153 = vpop.permute.xlu0 %152
    %154 = vrot.lane.b32.xlu0 %v145, 48
    %v155 = vpop.permute.xlu0 %154
    %156 = vrot.lane.b32.xlu0 %v147, 48
    %v157 = vpop.permute.xlu0 %156
    %158 = vrot.lane.b32.xlu0 %v146, 48
    %v159 = vpop.permute.xlu0 %158
    %vm167 = vcmask 1043456
    %v168 = vrot.slane %v62, 4
    %v169 = vrot.slane %v63, 4
    %v170 = vsel %vm167, %v168, %v169
    %v171 = vrot.slane %v64, 4
    %v172 = vsel %vm167, %v169, %v171
    %v173 = vrot.slane %v65, 4
    %v174 = vsel %vm167, %v171, %v173
    %v175 = vrot.slane %v66, 4
    %v176 = vsel %vm167, %v173, %v175
    %v177 = vrot.slane %v67, 4
    %v178 = vsel %vm167, %v175, %v177
    %v179 = vrot.slane %v68, 4
    %v180 = vsel %vm167, %v177, %v179
    %181 = vrot.lane.b32.xlu0 %v170, 64
    %v182 = vpop.permute.xlu0 %181
    %183 = vrot.lane.b32.xlu0 %v172, 64
    %v184 = vpop.permute.xlu0 %183
    %185 = vrot.lane.b32.xlu0 %v174, 64
    %v186 = vpop.permute.xlu0 %185
    %187 = vrot.lane.b32.xlu0 %v176, 64
    %v188 = vpop.permute.xlu0 %187
    %189 = vrot.lane.b32.xlu0 %v178, 64
    %v190 = vpop.permute.xlu0 %189
    %191 = vrot.lane.b32.xlu0 %v180, 64
    %v192 = vpop.permute.xlu0 %191
    %vm199 = vcmask 1042432
    %v200 = vrot.slane %v62, 5
    %v201 = vrot.slane %v63, 5
    %v202 = vsel %vm199, %v200, %v201
    %v203 = vrot.slane %v64, 5
    %v204 = vsel %vm199, %v201, %v203
    %v205 = vrot.slane %v65, 5
    %v206 = vsel %vm199, %v203, %v205
    %v207 = vrot.slane %v66, 5
    %v208 = vsel %vm199, %v205, %v207
    %v209 = vrot.slane %v67, 5
    %v210 = vsel %vm199, %v207, %v209
    %v211 = vrot.slane %v68, 5
    %v212 = vsel %vm199, %v209, %v211
    %213 = vrot.lane.b32.xlu0 %v202, 80
    %v214 = vpop.permute.xlu0 %213
    %215 = vrot.lane.b32.xlu0 %v204, 80
    %v216 = vpop.permute.xlu0 %215
    %217 = vrot.lane.b32.xlu0 %v206, 80
    %v218 = vpop.permute.xlu0 %217
    %219 = vrot.lane.b32.xlu0 %v208, 80
    %v220 = vpop.permute.xlu0 %219
    %221 = vrot.lane.b32.xlu0 %v210, 80
    %v222 = vpop.permute.xlu0 %221
    %223 = vrot.lane.b32.xlu0 %v212, 80
    %v224 = vpop.permute.xlu0 %223
    %vm231 = vcmask 1041408
    %v232 = vrot.slane %v62, 6
    %v233 = vrot.slane %v63, 6
    %v234 = vsel %vm231, %v232, %v233
    %v235 = vrot.slane %v64, 6
    %v236 = vsel %vm231, %v233, %v235
    %v237 = vrot.slane %v65, 6
    %v238 = vsel %vm231, %v235, %v237
    %v239 = vrot.slane %v66, 6
    %v240 = vsel %vm231, %v237, %v239
    %v241 = vrot.slane %v67, 6
    %v242 = vsel %vm231, %v239, %v241
    %v243 = vrot.slane %v68, 6
    %v244 = vsel %vm231, %v241, %v243
    %245 = vrot.lane.b32.xlu0 %v234, 96
    %v246 = vpop.permute.xlu0 %245
    %247 = vrot.lane.b32.xlu0 %v236, 96
    %v248 = vpop.permute.xlu0 %247
    %249 = vrot.lane.b32.xlu0 %v238, 96
    %v250 = vpop.permute.xlu0 %249
    %251 = vrot.lane.b32.xlu0 %v240, 96
    %v252 = vpop.permute.xlu0 %251
    %253 = vrot.lane.b32.xlu0 %v242, 96
    %v254 = vpop.permute.xlu0 %253
    %255 = vrot.lane.b32.xlu0 %v244, 96
    %v256 = vpop.permute.xlu0 %255
    %vm263 = vcmask 1040384
    %v264 = vrot.slane %v62, 7
    %v265 = vrot.slane %v63, 7
    %v266 = vsel %vm263, %v264, %v265
    %v267 = vrot.slane %v64, 7
    %v268 = vsel %vm263, %v265, %v267
    %v269 = vrot.slane %v65, 7
    %v270 = vsel %vm263, %v267, %v269
    %v271 = vrot.slane %v66, 7
    %v272 = vsel %vm263, %v269, %v271
    %v273 = vrot.slane %v67, 7
    %v274 = vsel %vm263, %v271, %v273
    %v275 = vrot.slane %v68, 7
    %v276 = vsel %vm263, %v273, %v275
    %277 = vrot.lane.b32.xlu0 %v266, 112
    %v278 = vpop.permute.xlu0 %277
    %279 = vrot.lane.b32.xlu0 %v268, 112
    %v280 = vpop.permute.xlu0 %279
    %281 = vrot.lane.b32.xlu0 %v270, 112
    %v282 = vpop.permute.xlu0 %281
    %283 = vrot.lane.b32.xlu0 %v272, 112
    %v284 = vpop.permute.xlu0 %283
    %285 = vrot.lane.b32.xlu0 %v274, 112
    %v286 = vpop.permute.xlu0 %285
    %287 = vrot.lane.b32.xlu0 %v276, 112
    %v288 = vpop.permute.xlu0 %287
    %v295 = vrot.slane %v68, 1
    %v296 = vsel %vm76, %v86, %v295
    %297 = vrot.lane.b32.xlu0 %v296, 16
    %v298 = vpop.permute.xlu0 %297
    %299 = vrot.lane.b32.xlu0 %v295, 16
    %v300 = vpop.permute.xlu0 %299
    %v303 = vrot.slane %v68, 2
    %v304 = vsel %vm106, %v116, %v303
    %305 = vrot.lane.b32.xlu0 %v304, 32
    %v306 = vpop.permute.xlu0 %305
    %307 = vrot.lane.b32.xlu0 %v303, 32
    %v308 = vpop.permute.xlu0 %307
    %v311 = vrot.slane %v68, 3
    %v312 = vsel %vm136, %v146, %v311
    %313 = vrot.lane.b32.xlu0 %v312, 48
    %v314 = vpop.permute.xlu0 %313
    %315 = vrot.lane.b32.xlu0 %v311, 48
    %v316 = vpop.permute.xlu0 %315
    %v320 = vrot.slane %v69, 4
    %v321 = vsel %vm167, %v179, %v320
    %322 = vrot.lane.b32.xlu0 %v321, 64
    %v323 = vpop.permute.xlu0 %322
    %v325 = vrot.slane %v69, 5
    %v326 = vsel %vm199, %v211, %v325
    %327 = vrot.lane.b32.xlu0 %v326, 80
    %v328 = vpop.permute.xlu0 %327
    %v330 = vrot.slane %v69, 6
    %v331 = vsel %vm231, %v243, %v330
    %332 = vrot.lane.b32.xlu0 %v331, 96
    %v333 = vpop.permute.xlu0 %332
    %v335 = vrot.slane %v69, 7
    %v336 = vsel %vm263, %v275, %v335
    %337 = vrot.lane.b32.xlu0 %v336, 112
    %v338 = vpop.permute.xlu0 %337
    %vm340 = vcmask 130048
    %v341 = vsel %vm340, %v62, %v89
    %v342 = vsel %vm340, %v63, %v91
    %v343 = vsel %vm340, %v64, %v93
    %v344 = vsel %vm340, %v65, %v95
    %v345 = vsel %vm340, %v66, %v97
    %v346 = vsel %vm340, %v67, %v99
    %vm347 = vcmask 261120
    %v348 = vsel %vm347, %v341, %v119
    %v349 = vsel %vm347, %v342, %v121
    %v350 = vsel %vm347, %v343, %v123
    %v351 = vsel %vm347, %v344, %v125
    %v352 = vsel %vm347, %v345, %v127
    %v353 = vsel %vm347, %v346, %v129
    %vm354 = vcmask 392192
    %v355 = vsel %vm354, %v348, %v149
    %v356 = vsel %vm354, %v349, %v151
    %v357 = vsel %vm354, %v350, %v153
    %v358 = vsel %vm354, %v351, %v155
    %v359 = vsel %vm354, %v352, %v157
    %v360 = vsel %vm354, %v353, %v159
    %vm361 = vcmask 523264
    %v362 = vsel %vm361, %v355, %v182
    %v363 = vsel %vm361, %v356, %v184
    %v364 = vsel %vm361, %v357, %v186
    %v365 = vsel %vm361, %v358, %v188
    %v366 = vsel %vm361, %v359, %v190
    %v367 = vsel %vm361, %v360, %v192
    %vm368 = vcmask 654336
    %v369 = vsel %vm368, %v362, %v214
    %v370 = vsel %vm368, %v363, %v216
    %v371 = vsel %vm368, %v364, %v218
    %v372 = vsel %vm368, %v365, %v220
    %v373 = vsel %vm368, %v366, %v222
    %v374 = vsel %vm368, %v367, %v224
    %vm375 = vcmask 785408
    %v376 = vsel %vm375, %v369, %v246
    %v377 = vsel %vm375, %v370, %v248
    %v378 = vsel %vm375, %v371, %v250
    %v379 = vsel %vm375, %v372, %v252
    %v380 = vsel %vm375, %v373, %v254
    %v381 = vsel %vm375, %v374, %v256
    %vm382 = vcmask 916480
    %v383 = vsel %vm382, %v376, %v278
    %v384 = vsel %vm382, %v377, %v280
    %v385 = vsel %vm382, %v378, %v282
    %v386 = vsel %vm382, %v379, %v284
    %v387 = vsel %vm382, %v380, %v286
    %v388 = vsel %vm382, %v381, %v288
    %v389 = vsel %vm340, %v67, %v298
    %v390 = vsel %vm340, %v68, %v300
    %v391 = vsel %vm347, %v389, %v306
    %v392 = vsel %vm347, %v390, %v308
    %v393 = vsel %vm354, %v391, %v314
    %v394 = vsel %vm354, %v392, %v316
    %v395 = vsel %vm361, %v393, %v192
    %v396 = vsel %vm361, %v394, %v323
    %v397 = vsel %vm368, %v395, %v224
    %v398 = vsel %vm368, %v396, %v328
    %v399 = vsel %vm375, %v397, %v256
    %v400 = vsel %vm375, %v398, %v333
    %v401 = vsel %vm382, %v399, %v288
    %v402 = vsel %vm382, %v400, %v338
    %v403 = vrot.slane %v69, 1
    %v404 = vsel %vm76, %v295, %v403
    %405 = vrot.lane.b32.xlu0 %v404, 16
    %v406 = vpop.permute.xlu0 %405
    %407 = vrot.lane.b32.xlu0 %v403, 16
    %v408 = vpop.permute.xlu0 %407
    %v411 = vrot.slane %v69, 2
    %v412 = vsel %vm106, %v303, %v411
    %413 = vrot.lane.b32.xlu0 %v412, 32
    %v414 = vpop.permute.xlu0 %413
    %415 = vrot.lane.b32.xlu0 %v411, 32
    %v416 = vpop.permute.xlu0 %415
    %v419 = vrot.slane %v69, 3
    %v420 = vsel %vm136, %v311, %v419
    %421 = vrot.lane.b32.xlu0 %v420, 48
    %v422 = vpop.permute.xlu0 %421
    %423 = vrot.lane.b32.xlu0 %v419, 48
    %v424 = vpop.permute.xlu0 %423
    %v427 = vsel %vm340, %v68, %v406
    %v428 = vsel %vm340, %v69, %v408
    %v429 = vsel %vm347, %v427, %v414
    %v430 = vsel %vm347, %v428, %v416
    %v431 = vsel %vm354, %v429, %v422
    %v432 = vsel %vm354, %v430, %v424
    %v433 = vld [vmem:[%s1] sm:$0xff]
    %v434 = vld [vmem:[%s1 + $0x8] sm:$0xff]
    %v435 = vld [vmem:[%s1 + $0x10] sm:$0xff]
    %v436 = vld [vmem:[%s1 + $0x18] sm:$0xff]
    %v437 = vld [vmem:[%s1 + $0x20] sm:$0xff]
    %v438 = vld [vmem:[%s1 + $0x28] sm:$0xff]
    %v439 = vld [vmem:[%s1 + $0x30] sm:$0xff]
    %v440 = vld [vmem:[%s1 + $0x38] sm:$0xff]
    %v441 = vld [vmem:[%s1 + $0x40] sm:$0xff]
    %v442 = vld [vmem:[%s1 + $0x48] sm:$0xff]
    %v443 = vld [vmem:[%s1 + $0x50] sm:$0xff]
    %v444 = vld [vmem:[%s1 + $0x58] sm:$0xff]
    %v445 = vld [vmem:[%s1 + $0x60] sm:$0xff]
    %v446 = vld [vmem:[%s1 + $0x68] sm:$0xff]
    %v447 = vld [vmem:[%s1 + $0x70] sm:$0xff]
    %v448 = vld [vmem:[%s1 + $0x78] sm:$0xff]
    %v449 = vld [vmem:[%s1 + $0x80] sm:$0xff]
    %v450 = vld [vmem:[%s1 + $0x88] sm:$0xff]
    %v451 = vld [vmem:[%s1 + $0x90] sm:$0xff]
    %v452 = vld [vmem:[%s1 + $0x98] sm:$0xff]
    %v453 = vld [vmem:[%s1 + $0xa0] sm:$0xff]
    %v454 = vld [vmem:[%s1 + $0xa8] sm:$0xff]
    %v455 = vld [vmem:[%s1 + $0xb0] sm:$0xff]
    %v456 = vld [vmem:[%s1 + $0xb8] sm:$0xff]
    %v457 = vld [vmem:[%s1 + $0xc0] sm:$0xff]
    %v458 = vld [vmem:[%s1 + $0xc8] sm:$0xff]
    %v459 = vld [vmem:[%s1 + $0xd0] sm:$0xff]
    %v460 = vld [vmem:[%s1 + $0xd8] sm:$0xff]
    %v461 = vld [vmem:[%s1 + $0xe0] sm:$0xff]
    %v462 = vld [vmem:[%s1 + $0xe8] sm:$0xff]
    %v463 = vld [vmem:[%s1 + $0xf0] sm:$0xff]
    %v464 = vld [vmem:[%s1 + $0xf8] sm:$0xff]
    %v465 = vld [vmem:[%s1 + $0x100] sm:$0xff]
    %v466 = vld [vmem:[%s1 + $0x108] sm:$0xff]
    %v467 = vld [vmem:[%s1 + $0x110] sm:$0xff]
    %v468 = vld [vmem:[%s1 + $0x118] sm:$0xff]
    %v469 = vld [vmem:[%s1 + $0x120] sm:$0xff]
    %v470 = vld [vmem:[%s1 + $0x128] sm:$0xff]
    %v471 = vld [vmem:[%s1 + $0x130] sm:$0xff]
    %v472 = vld [vmem:[%s1 + $0x138] sm:$0xff]
    %v473 = vld [vmem:[%s2] sm:$0x1]
    %v475 = vlaneseq
    %v476 = vshrl.u32 %v475, 7
    %v477 = vsub.s32 0, %v476
    %v478 = vrot.slane %v473, %v477
    %v481 = vsel %vm361, %v357, 0
    %v484 = vsel %vm361, %v358, 0
    %v487 = vsel %vm361, %v359, 0
    %v490 = vsel %vm361, %v393, 0
    %v493 = vsel %vm361, %v431, 0
    %v496 = vsel %vm361, %v432, 0
    %498 = vmatprep.subr.mxu0 0.0
    %499 = vmatpush1.msra.mxu0 %v448
    %500 = vmatprep.subr.mxu0 0.0
    %501 = vmatpush1.msra.mxu0 %v447
    %502 = vmatprep.subr.mxu0 0.0
    %503 = vmatpush1.msra.mxu0 %v446
    %504 = vmatprep.subr.mxu0 0.0
    %505 = vmatpush1.msra.mxu0 %v445
    %506 = vmatprep.subr.mxu0 0.0
    %507 = vmatpush1.msra.mxu0 %v444
    %508 = vmatprep.subr.mxu0 0.0
    %509 = vmatpush1.msra.mxu0 %v443
    %510 = vmatprep.subr.mxu0 0.0
    %511 = vmatpush1.msra.mxu0 %v442
    %512 = vmatprep.subr.mxu0 0.0
    %513 = vmatpush1.msra.mxu0 %v441
    %514 = vmatprep.subr.mxu0 0.0
    %515 = vmatpush1.msra.mxu0 %v440
    %516 = vmatprep.subr.mxu0 0.0
    %517 = vmatpush1.msra.mxu0 %v439
    %518 = vmatprep.subr.mxu0 0.0
    %519 = vmatpush1.msra.mxu0 %v438
    %520 = vmatprep.subr.mxu0 0.0
    %521 = vmatpush1.msra.mxu0 %v437
    %522 = vmatprep.subr.mxu0 0.0
    %523 = vmatpush1.msra.mxu0 %v436
    %524 = vmatprep.subr.mxu0 0.0
    %525 = vmatpush1.msra.mxu0 %v435
    %526 = vmatprep.subr.mxu0 0.0
    %527 = vmatpush1.msra.mxu0 %v434
    %528 = vmatprep.subr.mxu0 0.0
    %529 = vmatpush1.msra.mxu0 %v433
    %530 = vmatprep.subr.mxu0 0.0
    %531 = vmatpush2.msra.mxu0 %v464
    %532 = vmatprep.subr.mxu0 0.0
    %533 = vmatpush2.msra.mxu0 %v463
    %534 = vmatprep.subr.mxu0 0.0
    %535 = vmatpush2.msra.mxu0 %v462
    %536 = vmatprep.subr.mxu0 0.0
    %537 = vmatpush2.msra.mxu0 %v461
    %538 = vmatprep.subr.mxu0 0.0
    %539 = vmatpush2.msra.mxu0 %v460
    %540 = vmatprep.subr.mxu0 0.0
    %541 = vmatpush2.msra.mxu0 %v459
    %542 = vmatprep.subr.mxu0 0.0
    %543 = vmatpush2.msra.mxu0 %v458
    %544 = vmatprep.subr.mxu0 0.0
    %545 = vmatpush2.msra.mxu0 %v457
    %546 = vmatprep.subr.mxu0 0.0
    %547 = vmatpush2.msra.mxu0 %v456
    %548 = vmatprep.subr.mxu0 0.0
    %549 = vmatpush2.msra.mxu0 %v455
    %550 = vmatprep.subr.mxu0 0.0
    %551 = vmatpush2.msra.mxu0 %v454
    %552 = vmatprep.subr.mxu0 0.0
    %553 = vmatpush2.msra.mxu0 %v453
    %554 = vmatprep.subr.mxu0 0.0
    %555 = vmatpush2.msra.mxu0 %v452
    %556 = vmatprep.subr.mxu0 0.0
    %557 = vmatpush2.msra.mxu0 %v451
    %558 = vmatprep.subr.mxu0 0.0
    %559 = vmatpush2.msra.mxu0 %v450
    %560 = vmatprep.subr.mxu0 0.0
    %561 = vmatpush2.msra.mxu0 %v449
    %562 = vmatprep.mubr.f32.mxu0 %v384
    %563 = vmatmul.mubr.f32.gmra.mxu0 %v383
    %v564 = vpop.f32.mrf.mxu0
    %v565 = vadd.f32 %v478, %v564
    %v566 = vpop.f32.mrf.mxu0
    %567 = vmatprep.mubr.f32.mxu0 %v385
    %568 = vmatmul.mubr.f32.gmra.mxu0 %v384
    %v569 = vpop.f32.mrf.mxu0
    %v570 = vadd.f32 %v478, %v569
    %v571 = vpop.f32.mrf.mxu0
    %572 = vmatprep.mubr.f32.mxu0 %v386
    %573 = vmatmul.mubr.f32.gmra.mxu0 %v385
    %v574 = vpop.f32.mrf.mxu0
    %v575 = vpop.f32.mrf.mxu0
    %576 = vmatprep.mubr.f32.mxu0 %v387
    %577 = vmatmul.mubr.f32.gmra.mxu0 %v386
    %v578 = vpop.f32.mrf.mxu0
    %v579 = vpop.f32.mrf.mxu0
    %580 = vmatprep.mubr.f32.mxu0 %v401
    %581 = vmatmul.mubr.f32.gmra.mxu0 %v387
    %v582 = vpop.f32.mrf.mxu0
    %v583 = vadd.f32 %v478, %v582
    %v584 = vpop.f32.mrf.mxu0
    %585 = vmatprep.mubr.f32.mxu0 %v402
    %586 = vmatmul.mubr.f32.gmra.mxu0 %v388
    %v587 = vpop.f32.mrf.mxu0
    %v588 = vadd.f32 %v478, %v587
    %v589 = vpop.f32.mrf.mxu0
    %590 = vdwg.mxu0
    %591 = vmatprep.subr.mxu0 0.0
    %592 = vmatpush1.msra.mxu0 0.0
    %593 = vmatprep.subr.mxu0 0.0
    %594 = vmatpush1.msra.mxu0 0.0
    %595 = vmatprep.subr.mxu0 0.0
    %596 = vmatpush1.msra.mxu0 0.0
    %597 = vmatprep.subr.mxu0 0.0
    %598 = vmatpush1.msra.mxu0 0.0
    %599 = vmatprep.subr.mxu0 0.0
    %600 = vmatpush1.msra.mxu0 0.0
    %601 = vmatprep.subr.mxu0 0.0
    %602 = vmatpush1.msra.mxu0 0.0
    %603 = vmatprep.subr.mxu0 0.0
    %604 = vmatpush1.msra.mxu0 0.0
    %605 = vmatprep.subr.mxu0 0.0
    %606 = vmatpush1.msra.mxu0 0.0
    %607 = vmatprep.subr.mxu0 0.0
    %608 = vmatpush1.msra.mxu0 %v472
    %609 = vmatprep.subr.mxu0 0.0
    %610 = vmatpush1.msra.mxu0 %v471
    %611 = vmatprep.subr.mxu0 0.0
    %612 = vmatpush1.msra.mxu0 %v470
    %613 = vmatprep.subr.mxu0 0.0
    %614 = vmatpush1.msra.mxu0 %v469
    %615 = vmatprep.subr.mxu0 0.0
    %616 = vmatpush1.msra.mxu0 %v468
    %617 = vmatprep.subr.mxu0 0.0
    %618 = vmatpush1.msra.mxu0 %v467
    %619 = vmatprep.subr.mxu0 0.0
    %620 = vmatpush1.msra.mxu0 %v466
    %621 = vmatprep.subr.mxu0 0.0
    %622 = vmatpush1.msra.mxu0 %v465
    %623 = vmatprep.subr.mxu0 0.0
    %624 = vmatpush2.msra.mxu0 0.0
    %625 = vmatprep.subr.mxu0 0.0
    %626 = vmatpush2.msra.mxu0 0.0
    %627 = vmatprep.subr.mxu0 0.0
    %628 = vmatpush2.msra.mxu0 0.0
    %629 = vmatprep.subr.mxu0 0.0
    %630 = vmatpush2.msra.mxu0 0.0
    %631 = vmatprep.subr.mxu0 0.0
    %632 = vmatpush2.msra.mxu0 0.0
    %633 = vmatprep.subr.mxu0 0.0
    %634 = vmatpush2.msra.mxu0 0.0
    %635 = vmatprep.subr.mxu0 0.0
    %636 = vmatpush2.msra.mxu0 0.0
    %637 = vmatprep.subr.mxu0 0.0
    %638 = vmatpush2.msra.mxu0 0.0
    %639 = vmatprep.subr.mxu0 0.0
    %640 = vmatpush2.msra.mxu0 0.0
    %641 = vmatprep.subr.mxu0 0.0
    %642 = vmatpush2.msra.mxu0 0.0
    %643 = vmatprep.subr.mxu0 0.0
    %644 = vmatpush2.msra.mxu0 0.0
    %645 = vmatprep.subr.mxu0 0.0
    %646 = vmatpush2.msra.mxu0 0.0
    %647 = vmatprep.subr.mxu0 0.0
    %648 = vmatpush2.msra.mxu0 0.0
    %649 = vmatprep.subr.mxu0 0.0
    %650 = vmatpush2.msra.mxu0 0.0
    %651 = vmatprep.subr.mxu0 0.0
    %652 = vmatpush2.msra.mxu0 0.0
    %653 = vmatprep.subr.mxu0 0.0
    %654 = vmatpush2.msra.mxu0 0.0
    %655 = vmatprep.mubr.f32.mxu0 0.0
    %656 = vmatmul.mubr.f32.gmra.mxu0 %v481
    %v657 = vpop.f32.mrf.mxu0
    %v658 = vadd.f32 %v565, %v657
    %v659 = vpop.f32.mrf.mxu0
    %660 = vmatprep.mubr.f32.mxu0 0.0
    %661 = vmatmul.mubr.f32.gmra.mxu0 %v484
    %v662 = vpop.f32.mrf.mxu0
    %v663 = vadd.f32 %v570, %v662
    %v664 = vpop.f32.mrf.mxu0
    %665 = vmatprep.mubr.f32.mxu0 0.0
    %666 = vmatmul.mubr.f32.gmra.mxu0 %v487
    %v667 = vpop.f32.mrf.mxu0
    %v668 = vpop.f32.mrf.mxu0
    %669 = vmatprep.mubr.f32.mxu0 0.0
    %670 = vmatmul.mubr.f32.gmra.mxu0 %v490
    %v671 = vpop.f32.mrf.mxu0
    %v672 = vpop.f32.mrf.mxu0
    %673 = vmatprep.mubr.f32.mxu0 0.0
    %674 = vmatmul.mubr.f32.gmra.mxu0 %v493
    %v675 = vpop.f32.mrf.mxu0
    %v676 = vadd.f32 %v583, %v675
    %v677 = vpop.f32.mrf.mxu0
    %678 = vmatprep.mubr.f32.mxu0 0.0
    %679 = vmatmul.mubr.f32.gmra.mxu0 %v496
    %v680 = vpop.f32.mrf.mxu0
    %v681 = vadd.f32 %v588, %v680
    %v682 = vpop.f32.mrf.mxu0
    %683 = vdwg.mxu0
    %v684 = vmul.f32 %v658, 0.01
    %v685 = vmul.f32 %v663, 0.01
    %v686 = vmul.f32 %v676, 0.01
    %v687 = vmul.f32 %v681, 0.01
    %v688 = vmax.f32 %v658, %v684
    %v689 = vmax.f32 %v663, %v685
    %v690 = vmax.f32 %v676, %v686
    %v691 = vmax.f32 %v681, %v687
    %v694 = vrot.slane %v690, 3
    %v695 = vrot.slane %v691, 3
    %v696 = vsel %vm136, %v694, %v695
    %v699 = vsel %vm136, %v689, %v694
    %v702 = vrot.slane %v688, 1
    %v703 = vrot.slane %v699, 1
    %v704 = vsel %vm76, %v702, %v703
    %v705 = vrot.slane %v696, 1
    %v706 = vsel %vm76, %v703, %v705
    %707 = vrot.lane.b32.xlu0 %v704, 64
    %v708 = vpop.permute.xlu0 %707
    %709 = vrot.lane.b32.xlu0 %v706, 64
    %v710 = vpop.permute.xlu0 %709
    %711 = vrot.lane.b32.xlu0 %v705, 64
    %v712 = vpop.permute.xlu0 %711
    %v716 = vrot.slane %v688, 2
    %v717 = vrot.slane %v699, 2
    %v718 = vsel %vm106, %v716, %v717
    %v719 = vrot.slane %v696, 2
    %v720 = vsel %vm106, %v717, %v719
    %v724 = vrot.slane %v688, 3
    %v725 = vrot.slane %v699, 3
    %v726 = vsel %vm136, %v724, %v725
    %v727 = vrot.slane %v696, 3
    %v728 = vsel %vm136, %v725, %v727
    %v729 = vrot.slane %v695, 3
    %v730 = vsel %vm136, %v727, %v729
    %731 = vrot.lane.b32.xlu0 %v726, 64
    %v732 = vpop.permute.xlu0 %731
    %733 = vrot.lane.b32.xlu0 %v728, 64
    %v734 = vpop.permute.xlu0 %733
    %735 = vrot.lane.b32.xlu0 %v730, 64
    %v736 = vpop.permute.xlu0 %735
    %v740 = vrot.slane %v688, 4
    %v741 = vrot.slane %v699, 4
    %v742 = vsel %vm167, %v740, %v741
    %v743 = vrot.slane %v696, 4
    %v744 = vsel %vm167, %v741, %v743
    %v745 = vrot.slane %v695, 4
    %v746 = vsel %vm167, %v743, %v745
    %v747 = vsel %vm361, %v688, %v708
    %v748 = vsel %vm361, %v699, %v710
    %v749 = vsel %vm361, %v696, %v712
    %v750 = vsel %vm361, %v718, %v732
    %v751 = vsel %vm361, %v720, %v734
    %v752 = vsel %vm361, %v719, %v736
    %v753 = vld [vmem:[#allocation3] sm:$0xff]
    %v754 = vld [vmem:[#allocation3 + $0x8] sm:$0xff]
    %v755 = vld [vmem:[#allocation3 + $0x10] sm:$0xff]
    %v756 = vld [vmem:[#allocation3 + $0x18] sm:$0xff]
    %v757 = vld [vmem:[#allocation3 + $0x20] sm:$0xff]
    %v758 = vld [vmem:[#allocation3 + $0x28] sm:$0xff]
    %v759 = vld [vmem:[#allocation3 + $0x30] sm:$0xff]
    %v760 = vld [vmem:[#allocation3 + $0x38] sm:$0xff]
    %v761 = vld [vmem:[#allocation3 + $0x40] sm:$0xff]
    %v762 = vld [vmem:[#allocation3 + $0x48] sm:$0xff]
    %v763 = vld [vmem:[#allocation3 + $0x50] sm:$0xff]
    %v764 = vld [vmem:[#allocation3 + $0x58] sm:$0xff]
    %v765 = vld [vmem:[#allocation3 + $0x60] sm:$0xff]
    %v766 = vld [vmem:[#allocation3 + $0x68] sm:$0xff]
    %v767 = vld [vmem:[#allocation3 + $0x70] sm:$0xff]
    %v768 = vld [vmem:[#allocation3 + $0x78] sm:$0xff]
    %v769 = vld [vmem:[#allocation3 + $0x80] sm:$0xff]
    %v770 = vld [vmem:[#allocation3 + $0x88] sm:$0xff]
    %v771 = vld [vmem:[#allocation3 + $0x90] sm:$0xff]
    %v772 = vld [vmem:[#allocation3 + $0x98] sm:$0xff]
    %v773 = vld [vmem:[#allocation3 + $0xa0] sm:$0xff]
    %v774 = vld [vmem:[#allocation3 + $0xa8] sm:$0xff]
    %v775 = vld [vmem:[#allocation3 + $0xb0] sm:$0xff]
    %v776 = vld [vmem:[#allocation3 + $0xb8] sm:$0xff]
    %v777 = vld [vmem:[#allocation3 + $0xc0] sm:$0xff]
    %v778 = vld [vmem:[#allocation3 + $0xc8] sm:$0xff]
    %v779 = vld [vmem:[#allocation3 + $0xd0] sm:$0xff]
    %v780 = vld [vmem:[#allocation3 + $0xd8] sm:$0xff]
    %v781 = vld [vmem:[#allocation3 + $0xe0] sm:$0xff]
    %v782 = vld [vmem:[#allocation3 + $0xe8] sm:$0xff]
    %v783 = vld [vmem:[#allocation3 + $0xf0] sm:$0xff]
    %v784 = vld [vmem:[#allocation3 + $0xf8] sm:$0xff]
    %v785 = vld [vmem:[#allocation3 + $0x100] sm:$0xff]
    %v786 = vld [vmem:[#allocation3 + $0x108] sm:$0xff]
    %v787 = vld [vmem:[#allocation3 + $0x110] sm:$0xff]
    %v788 = vld [vmem:[#allocation3 + $0x118] sm:$0xff]
    %v789 = vld [vmem:[#allocation3 + $0x120] sm:$0xff]
    %v790 = vld [vmem:[#allocation3 + $0x128] sm:$0xff]
    %v791 = vld [vmem:[#allocation3 + $0x130] sm:$0xff]
    %v792 = vld [vmem:[#allocation3 + $0x138] sm:$0xff]
    %v793 = vld [vmem:[%s4] sm:$0x1]
    %v795 = vlaneseq
    %v796 = vshrl.u32 %v795, 7
    %v797 = vsub.s32 0, %v796
    %v798 = vrot.slane %v793, %v797
    %v800 = vsel %vm361, %v742, 0
    %v802 = vsel %vm361, %v744, 0
    %v804 = vsel %vm361, %v746, 0
    %806 = vmatprep.subr.mxu0 0.0
    %807 = vmatpush1.msra.mxu0 %v768
    %808 = vmatprep.subr.mxu0 0.0
    %809 = vmatpush1.msra.mxu0 %v767
    %810 = vmatprep.subr.mxu0 0.0
    %811 = vmatpush1.msra.mxu0 %v766
    %812 = vmatprep.subr.mxu0 0.0
    %813 = vmatpush1.msra.mxu0 %v765
    %814 = vmatprep.subr.mxu0 0.0
    %815 = vmatpush1.msra.mxu0 %v764
    %816 = vmatprep.subr.mxu0 0.0
    %817 = vmatpush1.msra.mxu0 %v763
    %818 = vmatprep.subr.mxu0 0.0
    %819 = vmatpush1.msra.mxu0 %v762
    %820 = vmatprep.subr.mxu0 0.0
    %821 = vmatpush1.msra.mxu0 %v761
    %822 = vmatprep.subr.mxu0 0.0
    %823 = vmatpush1.msra.mxu0 %v760
    %824 = vmatprep.subr.mxu0 0.0
    %825 = vmatpush1.msra.mxu0 %v759
    %826 = vmatprep.subr.mxu0 0.0
    %827 = vmatpush1.msra.mxu0 %v758
    %828 = vmatprep.subr.mxu0 0.0
    %829 = vmatpush1.msra.mxu0 %v757
    %830 = vmatprep.subr.mxu0 0.0
    %831 = vmatpush1.msra.mxu0 %v756
    %832 = vmatprep.subr.mxu0 0.0
    %833 = vmatpush1.msra.mxu0 %v755
    %834 = vmatprep.subr.mxu0 0.0
    %835 = vmatpush1.msra.mxu0 %v754
    %836 = vmatprep.subr.mxu0 0.0
    %837 = vmatpush1.msra.mxu0 %v753
    %838 = vmatprep.subr.mxu0 0.0
    %839 = vmatpush2.msra.mxu0 %v784
    %840 = vmatprep.subr.mxu0 0.0
    %841 = vmatpush2.msra.mxu0 %v783
    %842 = vmatprep.subr.mxu0 0.0
    %843 = vmatpush2.msra.mxu0 %v782
    %844 = vmatprep.subr.mxu0 0.0
    %845 = vmatpush2.msra.mxu0 %v781
    %846 = vmatprep.subr.mxu0 0.0
    %847 = vmatpush2.msra.mxu0 %v780
    %848 = vmatprep.subr.mxu0 0.0
    %849 = vmatpush2.msra.mxu0 %v779
    %850 = vmatprep.subr.mxu0 0.0
    %851 = vmatpush2.msra.mxu0 %v778
    %852 = vmatprep.subr.mxu0 0.0
    %853 = vmatpush2.msra.mxu0 %v777
    %854 = vmatprep.subr.mxu0 0.0
    %855 = vmatpush2.msra.mxu0 %v776
    %856 = vmatprep.subr.mxu0 0.0
    %857 = vmatpush2.msra.mxu0 %v775
    %858 = vmatprep.subr.mxu0 0.0
    %859 = vmatpush2.msra.mxu0 %v774
    %860 = vmatprep.subr.mxu0 0.0
    %861 = vmatpush2.msra.mxu0 %v773
    %862 = vmatprep.subr.mxu0 0.0
    %863 = vmatpush2.msra.mxu0 %v772
    %864 = vmatprep.subr.mxu0 0.0
    %865 = vmatpush2.msra.mxu0 %v771
    %866 = vmatprep.subr.mxu0 0.0
    %867 = vmatpush2.msra.mxu0 %v770
    %868 = vmatprep.subr.mxu0 0.0
    %869 = vmatpush2.msra.mxu0 %v769
    %870 = vmatprep.mubr.f32.mxu0 %v750
    %871 = vmatmul.mubr.f32.gmra.mxu0 %v747
    %v872 = vpop.f32.mrf.mxu0
    %v873 = vadd.f32 %v798, %v872
    %v874 = vpop.f32.mrf.mxu0
    %875 = vmatprep.mubr.f32.mxu0 %v751
    %876 = vmatmul.mubr.f32.gmra.mxu0 %v748
    %v877 = vpop.f32.mrf.mxu0
    %v878 = vadd.f32 %v798, %v877
    %v879 = vpop.f32.mrf.mxu0
    %880 = vmatprep.mubr.f32.mxu0 %v752
    %881 = vmatmul.mubr.f32.gmra.mxu0 %v749
    %v882 = vpop.f32.mrf.mxu0
    %v883 = vadd.f32 %v798, %v882
    %v884 = vpop.f32.mrf.mxu0
    %885 = vdwg.mxu0
    %886 = vmatprep.subr.mxu0 0.0
    %887 = vmatpush1.msra.mxu0 0.0
    %888 = vmatprep.subr.mxu0 0.0
    %889 = vmatpush1.msra.mxu0 0.0
    %890 = vmatprep.subr.mxu0 0.0
    %891 = vmatpush1.msra.mxu0 0.0
    %892 = vmatprep.subr.mxu0 0.0
    %893 = vmatpush1.msra.mxu0 0.0
    %894 = vmatprep.subr.mxu0 0.0
    %895 = vmatpush1.msra.mxu0 0.0
    %896 = vmatprep.subr.mxu0 0.0
    %897 = vmatpush1.msra.mxu0 0.0
    %898 = vmatprep.subr.mxu0 0.0
    %899 = vmatpush1.msra.mxu0 0.0
    %900 = vmatprep.subr.mxu0 0.0
    %901 = vmatpush1.msra.mxu0 0.0
    %902 = vmatprep.subr.mxu0 0.0
    %903 = vmatpush1.msra.mxu0 %v792
    %904 = vmatprep.subr.mxu0 0.0
    %905 = vmatpush1.msra.mxu0 %v791
    %906 = vmatprep.subr.mxu0 0.0
    %907 = vmatpush1.msra.mxu0 %v790
    %908 = vmatprep.subr.mxu0 0.0
    %909 = vmatpush1.msra.mxu0 %v789
    %910 = vmatprep.subr.mxu0 0.0
    %911 = vmatpush1.msra.mxu0 %v788
    %912 = vmatprep.subr.mxu0 0.0
    %913 = vmatpush1.msra.mxu0 %v787
    %914 = vmatprep.subr.mxu0 0.0
    %915 = vmatpush1.msra.mxu0 %v786
    %916 = vmatprep.subr.mxu0 0.0
    %917 = vmatpush1.msra.mxu0 %v785
    %918 = vmatprep.subr.mxu0 0.0
    %919 = vmatpush2.msra.mxu0 0.0
    %920 = vmatprep.subr.mxu0 0.0
    %921 = vmatpush2.msra.mxu0 0.0
    %922 = vmatprep.subr.mxu0 0.0
    %923 = vmatpush2.msra.mxu0 0.0
    %924 = vmatprep.subr.mxu0 0.0
    %925 = vmatpush2.msra.mxu0 0.0
    %926 = vmatprep.subr.mxu0 0.0
    %927 = vmatpush2.msra.mxu0 0.0
    %928 = vmatprep.subr.mxu0 0.0
    %929 = vmatpush2.msra.mxu0 0.0
    %930 = vmatprep.subr.mxu0 0.0
    %931 = vmatpush2.msra.mxu0 0.0
    %932 = vmatprep.subr.mxu0 0.0
    %933 = vmatpush2.msra.mxu0 0.0
    %934 = vmatprep.subr.mxu0 0.0
    %935 = vmatpush2.msra.mxu0 0.0
    %936 = vmatprep.subr.mxu0 0.0
    %937 = vmatpush2.msra.mxu0 0.0
    %938 = vmatprep.subr.mxu0 0.0
    %939 = vmatpush2.msra.mxu0 0.0
    %940 = vmatprep.subr.mxu0 0.0
    %941 = vmatpush2.msra.mxu0 0.0
    %942 = vmatprep.subr.mxu0 0.0
    %943 = vmatpush2.msra.mxu0 0.0
    %944 = vmatprep.subr.mxu0 0.0
    %945 = vmatpush2.msra.mxu0 0.0
    %946 = vmatprep.subr.mxu0 0.0
    %947 = vmatpush2.msra.mxu0 0.0
    %948 = vmatprep.subr.mxu0 0.0
    %949 = vmatpush2.msra.mxu0 0.0
    %950 = vmatprep.mubr.f32.mxu0 0.0
    %951 = vmatmul.mubr.f32.gmra.mxu0 %v800
    %v952 = vpop.f32.mrf.mxu0
    %v953 = vadd.f32 %v873, %v952
    %v954 = vpop.f32.mrf.mxu0
    %955 = vmatprep.mubr.f32.mxu0 0.0
    %956 = vmatmul.mubr.f32.gmra.mxu0 %v802
    %v957 = vpop.f32.mrf.mxu0
    %v958 = vadd.f32 %v878, %v957
    %v959 = vpop.f32.mrf.mxu0
    %960 = vmatprep.mubr.f32.mxu0 0.0
    %961 = vmatmul.mubr.f32.gmra.mxu0 %v804
    %v962 = vpop.f32.mrf.mxu0
    %v963 = vadd.f32 %v883, %v962
    %v964 = vpop.f32.mrf.mxu0
    %965 = vdwg.mxu0
    %v966 = vmul.f32 %v953, 0.01
    %v967 = vmul.f32 %v958, 0.01
    %v968 = vmul.f32 %v963, 0.01
    %v969 = vmax.f32 %v953, %v966
    %v970 = vmax.f32 %v958, %v967
    %v971 = vmax.f32 %v963, %v968
    %v975 = vrot.slane %v969, 1
    %v976 = vrot.slane %v970, 1
    %v977 = vsel %vm76, %v975, %v976
    %v978 = vrot.slane %v971, 1
    %v979 = vsel %vm76, %v976, %v978
    %v983 = vrot.slane %v969, 2
    %v984 = vrot.slane %v970, 2
    %v985 = vsel %vm106, %v983, %v984
    %v986 = vrot.slane %v971, 2
    %v987 = vsel %vm106, %v984, %v986
    %v991 = vld [vmem:[#allocation5] sm:$0xff]
    %v992 = vld [vmem:[#allocation5 + $0x8] sm:$0xff]
    %v993 = vld [vmem:[#allocation5 + $0x10] sm:$0xff]
    %v994 = vld [vmem:[#allocation5 + $0x18] sm:$0xff]
    %v995 = vld [vmem:[#allocation5 + $0x20] sm:$0xff]
    %v996 = vld [vmem:[#allocation5 + $0x28] sm:$0xff]
    %v997 = vld [vmem:[#allocation5 + $0x30] sm:$0xff]
    %v998 = vld [vmem:[#allocation5 + $0x38] sm:$0xff]
    %v999 = vld [vmem:[#allocation5 + $0x40] sm:$0xff]
    %v1000 = vld [vmem:[#allocation5 + $0x48] sm:$0xff]
    %v1001 = vld [vmem:[#allocation5 + $0x50] sm:$0xff]
    %v1002 = vld [vmem:[#allocation5 + $0x58] sm:$0xff]
    %v1003 = vld [vmem:[#allocation5 + $0x60] sm:$0xff]
    %v1004 = vld [vmem:[#allocation5 + $0x68] sm:$0xff]
    %v1005 = vld [vmem:[#allocation5 + $0x70] sm:$0xff]
    %v1006 = vld [vmem:[#allocation5 + $0x78] sm:$0xff]
    %v1007 = vld [vmem:[#allocation5 + $0x80] sm:$0xff]
    %v1008 = vld [vmem:[#allocation5 + $0x88] sm:$0xff]
    %v1009 = vld [vmem:[#allocation5 + $0x90] sm:$0xff]
    %v1010 = vld [vmem:[#allocation5 + $0x98] sm:$0xff]
    %v1011 = vld [vmem:[#allocation5 + $0xa0] sm:$0xff]
    %v1012 = vld [vmem:[#allocation5 + $0xa8] sm:$0xff]
    %v1013 = vld [vmem:[#allocation5 + $0xb0] sm:$0xff]
    %v1014 = vld [vmem:[#allocation5 + $0xb8] sm:$0xff]
    %v1015 = vld [vmem:[#allocation5 + $0xc0] sm:$0xff]
    %v1016 = vld [vmem:[#allocation5 + $0xc8] sm:$0xff]
    %v1017 = vld [vmem:[#allocation5 + $0xd0] sm:$0xff]
    %v1018 = vld [vmem:[#allocation5 + $0xd8] sm:$0xff]
    %v1019 = vld [vmem:[#allocation5 + $0xe0] sm:$0xff]
    %v1020 = vld [vmem:[#allocation5 + $0xe8] sm:$0xff]
    %v1021 = vld [vmem:[#allocation5 + $0xf0] sm:$0xff]
    %v1022 = vld [vmem:[#allocation5 + $0xf8] sm:$0xff]
    %v1023 = vld [vmem:[#allocation5 + $0x100] sm:$0xff]
    %v1024 = vld [vmem:[#allocation5 + $0x108] sm:$0xff]
    %v1025 = vld [vmem:[#allocation5 + $0x110] sm:$0xff]
    %v1026 = vld [vmem:[#allocation5 + $0x118] sm:$0xff]
    %v1027 = vld [vmem:[#allocation5 + $0x120] sm:$0xff]
    %v1028 = vld [vmem:[#allocation5 + $0x128] sm:$0xff]
    %v1029 = vld [vmem:[#allocation5 + $0x130] sm:$0xff]
    %v1030 = vld [vmem:[#allocation5 + $0x138] sm:$0xff]
    %v1031 = vld [vmem:[#allocation5 + $0x140] sm:$0xff]
    %v1032 = vld [vmem:[#allocation5 + $0x148] sm:$0xff]
    %v1033 = vld [vmem:[#allocation5 + $0x150] sm:$0xff]
    %v1034 = vld [vmem:[#allocation5 + $0x158] sm:$0xff]
    %v1035 = vld [vmem:[#allocation5 + $0x160] sm:$0xff]
    %v1036 = vld [vmem:[#allocation5 + $0x168] sm:$0xff]
    %v1037 = vld [vmem:[#allocation5 + $0x170] sm:$0xff]
    %v1038 = vld [vmem:[#allocation5 + $0x178] sm:$0xff]
    %v1039 = vld [vmem:[%s6] sm:$0x1]
    %v1041 = vlaneseq
    %v1042 = vshrl.u32 %v1041, 7
    %v1043 = vsub.s32 0, %v1042
    %v1044 = vrot.slane %v1039, %v1043
    %1046 = vmatprep.subr.mxu0 0.0
    %1047 = vmatpush1.msra.mxu0 %v1006
    %1048 = vmatprep.subr.mxu0 0.0
    %1049 = vmatpush1.msra.mxu0 %v1005
    %1050 = vmatprep.subr.mxu0 0.0
    %1051 = vmatpush1.msra.mxu0 %v1004
    %1052 = vmatprep.subr.mxu0 0.0
    %1053 = vmatpush1.msra.mxu0 %v1003
    %1054 = vmatprep.subr.mxu0 0.0
    %1055 = vmatpush1.msra.mxu0 %v1002
    %1056 = vmatprep.subr.mxu0 0.0
    %1057 = vmatpush1.msra.mxu0 %v1001
    %1058 = vmatprep.subr.mxu0 0.0
    %1059 = vmatpush1.msra.mxu0 %v1000
    %1060 = vmatprep.subr.mxu0 0.0
    %1061 = vmatpush1.msra.mxu0 %v999
    %1062 = vmatprep.subr.mxu0 0.0
    %1063 = vmatpush1.msra.mxu0 %v998
    %1064 = vmatprep.subr.mxu0 0.0
    %1065 = vmatpush1.msra.mxu0 %v997
    %1066 = vmatprep.subr.mxu0 0.0
    %1067 = vmatpush1.msra.mxu0 %v996
    %1068 = vmatprep.subr.mxu0 0.0
    %1069 = vmatpush1.msra.mxu0 %v995
    %1070 = vmatprep.subr.mxu0 0.0
    %1071 = vmatpush1.msra.mxu0 %v994
    %1072 = vmatprep.subr.mxu0 0.0
    %1073 = vmatpush1.msra.mxu0 %v993
    %1074 = vmatprep.subr.mxu0 0.0
    %1075 = vmatpush1.msra.mxu0 %v992
    %1076 = vmatprep.subr.mxu0 0.0
    %1077 = vmatpush1.msra.mxu0 %v991
    %1078 = vmatprep.subr.mxu0 0.0
    %1079 = vmatpush2.msra.mxu0 %v1022
    %1080 = vmatprep.subr.mxu0 0.0
    %1081 = vmatpush2.msra.mxu0 %v1021
    %1082 = vmatprep.subr.mxu0 0.0
    %1083 = vmatpush2.msra.mxu0 %v1020
    %1084 = vmatprep.subr.mxu0 0.0
    %1085 = vmatpush2.msra.mxu0 %v1019
    %1086 = vmatprep.subr.mxu0 0.0
    %1087 = vmatpush2.msra.mxu0 %v1018
    %1088 = vmatprep.subr.mxu0 0.0
    %1089 = vmatpush2.msra.mxu0 %v1017
    %1090 = vmatprep.subr.mxu0 0.0
    %1091 = vmatpush2.msra.mxu0 %v1016
    %1092 = vmatprep.subr.mxu0 0.0
    %1093 = vmatpush2.msra.mxu0 %v1015
    %1094 = vmatprep.subr.mxu0 0.0
    %1095 = vmatpush2.msra.mxu0 %v1014
    %1096 = vmatprep.subr.mxu0 0.0
    %1097 = vmatpush2.msra.mxu0 %v1013
    %1098 = vmatprep.subr.mxu0 0.0
    %1099 = vmatpush2.msra.mxu0 %v1012
    %1100 = vmatprep.subr.mxu0 0.0
    %1101 = vmatpush2.msra.mxu0 %v1011
    %1102 = vmatprep.subr.mxu0 0.0
    %1103 = vmatpush2.msra.mxu0 %v1010
    %1104 = vmatprep.subr.mxu0 0.0
    %1105 = vmatpush2.msra.mxu0 %v1009
    %1106 = vmatprep.subr.mxu0 0.0
    %1107 = vmatpush2.msra.mxu0 %v1008
    %1108 = vmatprep.subr.mxu0 0.0
    %1109 = vmatpush2.msra.mxu0 %v1007
    %1110 = vmatprep.mubr.f32.mxu0 %v977
    %1111 = vmatmul.mubr.f32.gmra.mxu0 %v969
    %v1112 = vpop.f32.mrf.mxu0
    %v1113 = vadd.f32 %v1044, %v1112
    %v1114 = vpop.f32.mrf.mxu0
    %1115 = vmatprep.mubr.f32.mxu0 %v979
    %1116 = vmatmul.mubr.f32.gmra.mxu0 %v970
    %v1117 = vpop.f32.mrf.mxu0
    %v1118 = vadd.f32 %v1044, %v1117
    %v1119 = vpop.f32.mrf.mxu0
    %1120 = vmatprep.mubr.f32.mxu0 %v978
    %1121 = vmatmul.mubr.f32.gmra.mxu0 %v971
    %v1122 = vpop.f32.mrf.mxu0
    %v1123 = vadd.f32 %v1044, %v1122
    %v1124 = vpop.f32.mrf.mxu0
    %1125 = vdwg.mxu0
    %1126 = vmatprep.subr.mxu0 0.0
    %1127 = vmatpush1.msra.mxu0 %v1038
    %1128 = vmatprep.subr.mxu0 0.0
    %1129 = vmatpush1.msra.mxu0 %v1037
    %1130 = vmatprep.subr.mxu0 0.0
    %1131 = vmatpush1.msra.mxu0 %v1036
    %1132 = vmatprep.subr.mxu0 0.0
    %1133 = vmatpush1.msra.mxu0 %v1035
    %1134 = vmatprep.subr.mxu0 0.0
    %1135 = vmatpush1.msra.mxu0 %v1034
    %1136 = vmatprep.subr.mxu0 0.0
    %1137 = vmatpush1.msra.mxu0 %v1033
    %1138 = vmatprep.subr.mxu0 0.0
    %1139 = vmatpush1.msra.mxu0 %v1032
    %1140 = vmatprep.subr.mxu0 0.0
    %1141 = vmatpush1.msra.mxu0 %v1031
    %1142 = vmatprep.subr.mxu0 0.0
    %1143 = vmatpush1.msra.mxu0 %v1030
    %1144 = vmatprep.subr.mxu0 0.0
    %1145 = vmatpush1.msra.mxu0 %v1029
    %1146 = vmatprep.subr.mxu0 0.0
    %1147 = vmatpush1.msra.mxu0 %v1028
    %1148 = vmatprep.subr.mxu0 0.0
    %1149 = vmatpush1.msra.mxu0 %v1027
    %1150 = vmatprep.subr.mxu0 0.0
    %1151 = vmatpush1.msra.mxu0 %v1026
    %1152 = vmatprep.subr.mxu0 0.0
    %1153 = vmatpush1.msra.mxu0 %v1025
    %1154 = vmatprep.subr.mxu0 0.0
    %1155 = vmatpush1.msra.mxu0 %v1024
    %1156 = vmatprep.subr.mxu0 0.0
    %1157 = vmatpush1.msra.mxu0 %v1023
    %1158 = vmatprep.subr.mxu0 0.0
    %1159 = vmatpush2.msra.mxu0 0.0
    %1160 = vmatprep.subr.mxu0 0.0
    %1161 = vmatpush2.msra.mxu0 0.0
    %1162 = vmatprep.subr.mxu0 0.0
    %1163 = vmatpush2.msra.mxu0 0.0
    %1164 = vmatprep.subr.mxu0 0.0
    %1165 = vmatpush2.msra.mxu0 0.0
    %1166 = vmatprep.subr.mxu0 0.0
    %1167 = vmatpush2.msra.mxu0 0.0
    %1168 = vmatprep.subr.mxu0 0.0
    %1169 = vmatpush2.msra.mxu0 0.0
    %1170 = vmatprep.subr.mxu0 0.0
    %1171 = vmatpush2.msra.mxu0 0.0
    %1172 = vmatprep.subr.mxu0 0.0
    %1173 = vmatpush2.msra.mxu0 0.0
    %1174 = vmatprep.subr.mxu0 0.0
    %1175 = vmatpush2.msra.mxu0 0.0
    %1176 = vmatprep.subr.mxu0 0.0
    %1177 = vmatpush2.msra.mxu0 0.0
    %1178 = vmatprep.subr.mxu0 0.0
    %1179 = vmatpush2.msra.mxu0 0.0
    %1180 = vmatprep.subr.mxu0 0.0
    %1181 = vmatpush2.msra.mxu0 0.0
    %1182 = vmatprep.subr.mxu0 0.0
    %1183 = vmatpush2.msra.mxu0 0.0
    %1184 = vmatprep.subr.mxu0 0.0
    %1185 = vmatpush2.msra.mxu0 0.0
    %1186 = vmatprep.subr.mxu0 0.0
    %1187 = vmatpush2.msra.mxu0 0.0
    %1188 = vmatprep.subr.mxu0 0.0
    %1189 = vmatpush2.msra.mxu0 0.0
    %1190 = vmatprep.mubr.f32.mxu0 0.0
    %1191 = vmatmul.mubr.f32.gmra.mxu0 %v985
    %v1192 = vpop.f32.mrf.mxu0
    %v1193 = vadd.f32 %v1113, %v1192
    %v1194 = vpop.f32.mrf.mxu0
    %1195 = vmatprep.mubr.f32.mxu0 0.0
    %1196 = vmatmul.mubr.f32.gmra.mxu0 %v987
    %v1197 = vpop.f32.mrf.mxu0
    %v1198 = vadd.f32 %v1118, %v1197
    %v1199 = vpop.f32.mrf.mxu0
    %1200 = vmatprep.mubr.f32.mxu0 0.0
    %1201 = vmatmul.mubr.f32.gmra.mxu0 %v986
    %v1202 = vpop.f32.mrf.mxu0
    %v1203 = vadd.f32 %v1123, %v1202
    %v1204 = vpop.f32.mrf.mxu0
    %1205 = vdwg.mxu0
    %v1206 = vmul.f32 %v1193, 0.01
    %v1207 = vmul.f32 %v1198, 0.01
    %v1208 = vmul.f32 %v1203, 0.01
    %v1209 = vmax.f32 %v1193, %v1206
    %v1210 = vmax.f32 %v1198, %v1207
    %v1211 = vmax.f32 %v1203, %v1208
    %v1212 = vld [vmem:[%s7] sm:$0x1]
    %v1214 = vlaneseq
    %v1215 = vshrl.u32 %v1214, 7
    %v1216 = vsub.s32 0, %v1215
    %v1217 = vrot.slane %v1212, %v1216
    %v1219 = vmul.f32 %v1209, %v1217
    %v1220 = vmul.f32 %v1210, %v1217
    %v1221 = vmul.f32 %v1211, %v1217
    %1222 = vadd.xlane.f32.xlu0 %v1219
    %v1223 = vpop.xlane.xlu0 %1222
    %1224 = vadd.xlane.f32.xlu0 %v1220
    %v1225 = vpop.xlane.xlu0 %1224
    %v1226 = vsel %vm167, %v1221, 0.0
    %1227 = vadd.xlane.f32.xlu0 %v1226
    %v1228 = vpop.xlane.xlu0 %1227
    %v1229 = vld [vmem:[#allocation2] sm:$0x1]
    %v1231 = vlaneseq
    %v1232 = vshrl.u32 %v1231, 7
    %v1233 = vsub.s32 0, %v1232
    %v1234 = vrot.slane %v1229, %v1233
    %v1236 = vadd.f32 %v1223, %v1234
    %v1237 = vadd.f32 %v1225, %v1234
    %v1238 = vadd.f32 %v1228, %v1234
    %v1241 = vrot.slane %v1237, 6
    %v1242 = vrot.slane %v1238, 6
    %v1243 = vsel %vm231, %v1241, %v1242
    %v1246 = vsel %vm76, %v1236, %v1241
    %vm1247 = vcmask 7168
    %1248 = vst.msk [vmem:[%s9] sm:$0xff] %vm1247, %v1246
    %vm1249 = vcmask 5120
    %1250 = vst.msk [vmem:[%s9 + $0x8] sm:$0x3f] %vm1249, %v1243
    // Predicated region
    $region46: #{_lambda_.1} parent=1 // pred_check
      _
    $region47: #{_lambda_.1} parent=1 // pred_check_branch
      %1252 = sbr.rel (0) target = $region49
    $region48: #{_lambda_.1} parent=1 // pred_region
      _
    $region49: #{_lambda_.1} parent=1 // pred_fallthru
      _
    // Predicated region
    $region50: #{_lambda_.1} parent=1 // pred_check
      _
    $region51: #{_lambda_.1} parent=1 // pred_check_branch
      %1254 = sbr.rel (0) target = $region53
    $region52: #{_lambda_.1} parent=1 // pred_region
      _
    $region53: #{_lambda_.1} parent=1 // pred_fallthru
      _
    %1255 = vsyncpa [#allocation4], 1
    %1256 = vsyncpa [#allocation6], 1

</llo_original>
